<compile_context>
chip_gen: v7x
topology: tpu7x:2x2x1
jax: 0.10.0
libtpu: 0.0.40
codegen_flags: <defaults>
</compile_context>

<pallas_src>
import jax
import jax.numpy as jnp
import numpy as np
from jax.experimental import pallas as pl
from jax.experimental.pallas import tpu as pltpu

_MIB = 1024 * 1024


def _vmem_capacity_bytes():
    """Best-effort per-core VMEM capacity; conservative (v7x 64 MiB) default if unknown."""
    try:
        cap = int(getattr(pltpu.get_tpu_info(), "vmem_capacity_bytes", 0) or 0)
        if cap >= 16 * _MIB:
            return cap
    except Exception:
        pass
    return 64 * _MIB


def _per_buffer_budget(cap, n_streams):
    # Keep the double-buffered streaming footprint <= ~45% of VMEM (leaves room for the
    # f32 pooling temporary + compiler scratch).  Cap 12 MiB / buffer, floor 512 KiB.
    return max(512 * 1024, min(12 * _MIB, int(0.45 * cap) // (2 * n_streams)))


def _choose_l_tile(L, C, itemsize, budget, l_tile=None):
    if l_tile is not None:
        assert L % l_tile == 0, "l_tile must divide (padded) L"
        assert l_tile == L or l_tile % 128 == 0, "l_tile must be a multiple of 128 (or == L)"
        return l_tile
    row_bytes = max(C * itemsize, 1)
    max_lanes = max(128, (budget // row_bytes) // 128 * 128)
    # DMA-efficiency floor: >=2 KiB contiguous rows, if that only costs <= 2x the budget.
    min_lanes = max(128, 2048 // itemsize)
    if max_lanes < min_lanes and min_lanes * row_bytes <= 2 * budget:
        max_lanes = min_lanes
    if L <= max_lanes or L % 128 != 0:
        return L                                   # single whole-L block per batch element
    lt = max_lanes
    while lt > 128 and L % lt != 0:
        lt -= 128
    return lt


def spatial_attention(x, another_x, w, b, *, l_tile=None, pad_to_128=None):
    """out = another_x * sigmoid(Conv1d(2,1,k=3,'same')([max_c(x); mean_c(x)]))."""
    single_input = (another_x is None) or (another_x is x)
    B, C, L = x.shape
    out_dtype = x.dtype if single_input else another_x.dtype
    n_streams = 2 if single_input else 3                       # HBM streams: x (+ax) + out

    cap = _vmem_capacity_bytes()
    budget = _per_buffer_budget(cap, n_streams)
    itemsize = max(x.dtype.itemsize, out_dtype.itemsize)

    # Pad L to a multiple of 128 when the whole-L fallback would bust the VMEM budget.
    # Zero columns pool to (max=0, sum=0) which equals the conv's 'same' zero padding,
    # so semantics are preserved; padded output columns are sliced off below.
    if pad_to_128 is None:
        pad_to_128 = (L % 128 != 0) and (C * L * itemsize > budget)
    L_pad = ((L + 127) // 128) * 128 if (pad_to_128 and L % 128 != 0) else L
    if L_pad != L:
        pad_cfg = ((0, 0), (0, 0), (0, L_pad - L))
        x_p = jnp.pad(x, pad_cfg)
        ax_p = x_p if single_input else jnp.pad(another_x, pad_cfg)
    else:
        x_p = x
        ax_p = x_p if single_input else another_x

    Lt = _choose_l_tile(L_pad, C, itemsize, budget, l_tile)
    n_tiles = L_pad // Lt
    has_halo = n_tiles > 1

    # Fold 1/C into the avg-pool weight row; flatten weights/bias to SMEM scalars.
    w = jnp.asarray(w, jnp.float32).reshape(2, 3)
    w_flat = jnp.concatenate([w[0, :], w[1, :] / C]).reshape(6)
    b_flat = jnp.asarray(b, jnp.float32).reshape(1)

    tile_map = lambda bi, j: (bi, 0, j)
    in_specs = [
        pl.BlockSpec(memory_space=pltpu.SMEM),                 # conv weights (6,)
        pl.BlockSpec(memory_space=pltpu.SMEM),                 # conv bias    (1,)
        pl.BlockSpec((1, C, Lt), tile_map),                    # x tile
    ]
    inputs = [w_flat, b_flat, x_p]
    if has_halo:
        r = Lt // 128                                          # 128-col blocks per tile
        nb = L_pad // 128                                      # total 128-col blocks
        lh_map = lambda bi, j: (bi, 0, jnp.maximum(j * r - 1, 0))
        rh_map = lambda bi, j: (bi, 0, jnp.minimum((j + 1) * r, nb - 1))
        in_specs += [pl.BlockSpec((1, C, 128), lh_map),        # left-neighbour halo block
                     pl.BlockSpec((1, C, 128), rh_map)]        # right-neighbour halo block
        inputs += [x_p, x_p]
    if not single_input:
        in_specs.append(pl.BlockSpec((1, C, Lt), tile_map))    # another_x tile
        inputs.append(ax_p)
    out_spec = pl.BlockSpec((1, C, Lt), tile_map)

    def kernel(w_ref, b_ref, *refs):
        refs = list(refs)
        x_ref = refs.pop(0)
        if has_halo:
            lh_ref = refs.pop(0)
            rh_ref = refs.pop(0)
        src_ref = x_ref if single_input else refs.pop(0)
        o_ref = refs.pop(0)

        lt = x_ref.shape[2]

        # ---- channel pooling of the x tile (max + sum; 1/C folded into the weights) ----
        xf = x_ref[0].astype(jnp.float32)                      # (C, Lt)
        mx = jnp.max(xf, axis=0, keepdims=True)                # (1, Lt)
        sm = jnp.sum(xf, axis=0, keepdims=True)                # (1, Lt)
        p = jnp.concatenate([mx, sm], axis=0)                  # (2, Lt)

        # ---- halo columns for the k=3 'same' seams (zero at the global edges) ----
        if has_halo:
            j = pl.program_id(1)
            n_t = pl.num_programs(1)
            lcolx = lh_ref[0][:, 127:128].astype(jnp.float32)  # (C, 1) last col of left block
            rcolx = rh_ref[0][:, 0:1].astype(jnp.float32)      # (C, 1) first col of right block
            lcol = jnp.concatenate([jnp.max(lcolx, axis=0, keepdims=True),
                                    jnp.sum(lcolx, axis=0, keepdims=True)], axis=0)
            rcol = jnp.concatenate([jnp.max(rcolx, axis=0, keepdims=True),
                                    jnp.sum(rcolx, axis=0, keepdims=True)], axis=0)
            zero = jnp.zeros((2, 1), jnp.float32)
            left = jnp.where(j == 0, zero, lcol)
            right = jnp.where(j == n_t - 1, zero, rcol)
        else:
            left = jnp.zeros((2, 1), jnp.float32)
            right = jnp.zeros((2, 1), jnp.float32)

        # ---- Conv1d(2,1,k=3,'same') as scalar-weighted shifted rows (cross-correlation) ----
        pm1 = jnp.concatenate([left, p[:, :lt - 1]], axis=1)   # p[:, l-1]
        pp1 = jnp.concatenate([p[:, 1:], right], axis=1)       # p[:, l+1]
        y = (w_ref[0] * pm1[0:1] + w_ref[1] * p[0:1] + w_ref[2] * pp1[0:1]
             + w_ref[3] * pm1[1:2] + w_ref[4] * p[1:2] + w_ref[5] * pp1[1:2]
             + b_ref[0])                                       # (1, Lt)
        attn = jax.nn.sigmoid(y)                               # (1, Lt) f32

        # ---- attention multiply in the source dtype (bf16 stays bf16 on the big tile) ----
        src = src_ref[0]
        if src.dtype == jnp.float32:
            out = src * attn
        else:
            out = src * attn.astype(src.dtype)
        o_ref[0] = out.astype(o_ref.dtype)

    # VMEM limit sized from actual usage (+ margin), clamped below physical capacity.
    tile_elems = C * Lt
    need = (2 * tile_elems * x.dtype.itemsize                  # x, double-buffered
            + 2 * tile_elems * out_dtype.itemsize              # out, double-buffered
            + (0 if single_input else 2 * tile_elems * ax_p.dtype.itemsize)
            + (4 * C * 128 * x.dtype.itemsize if has_halo else 0)
            + tile_elems * 4                                   # f32 pooling temporary
            + 8 * _MIB)                                        # compiler scratch margin
    vmem_limit = int(min(max(need, 32 * _MIB), int(0.8 * cap)))

    bytes_accessed = B * C * L_pad * (x.dtype.itemsize + out_dtype.itemsize)
    if not single_input:
        bytes_accessed += B * C * L_pad * ax_p.dtype.itemsize
    cost = pl.CostEstimate(flops=int(B * L_pad * (3 * C + 16)),
                           transcendentals=int(B * L_pad),
                           bytes_accessed=int(bytes_accessed))

    out = pl.pallas_call(
        kernel,
        out_shape=jax.ShapeDtypeStruct((B, C, L_pad), out_dtype),
        grid_spec=pltpu.PrefetchScalarGridSpec(
            num_scalar_prefetch=0,
            grid=(B, n_tiles),
            in_specs=in_specs,
            out_specs=out_spec,
        ),
        compiler_params=pltpu.CompilerParams(
            dimension_semantics=("parallel", "parallel"),
            vmem_limit_bytes=vmem_limit,
        ),
        cost_estimate=cost,
    )(*inputs)
    return out if L_pad == L else out[:, :, :L]


def spatial_attention_ref(x, another_x, w, b):
    max_pool = jnp.max(x, axis=1, keepdims=True)
    avg_pool = jnp.mean(x, axis=1, keepdims=True)
    pooled = jnp.concatenate([max_pool, avg_pool], axis=1)     # (B, 2, L)
    padded = jnp.pad(pooled, ((0, 0), (0, 0), (1, 1)))
    y = (padded[:, :, :-2] * w[:, 0:1] +
         padded[:, :, 1:-1] * w[:, 1:2] +
         padded[:, :, 2:] * w[:, 2:3])
    y = jnp.sum(y, axis=1, keepdims=True) + jnp.reshape(b, ())
    return another_x * jax.nn.sigmoid(y)


if __name__ == "__main__":
    key = jax.random.PRNGKey(0)
    k1, k2, k3, k4 = jax.random.split(key, 4)

    # Conv1d(2, 1, kernel_size=3) params: weight (1,2,3) squeezed to (2,3); bias (1,1).
    bound = 1.0 / np.sqrt(2 * 3)
    w = jax.random.uniform(k3, (2, 3), jnp.float32, minval=-bound, maxval=bound)
    b = jax.random.uniform(k4, (1, 1), jnp.float32, minval=-bound, maxval=bound)

    # Case 1: tiny shape -> single whole-L block per batch element (C=4 exercises sublane pad).
    B, C, L = 2, 4, 16
    x = jax.random.normal(k1, (B, C, L), dtype=jnp.float32)
    another_x = jax.random.normal(k2, (B, C, L), dtype=jnp.float32)
    out = jax.block_until_ready(spatial_attention(x, another_x, w, b))
    ref = spatial_attention_ref(x, another_x, w, b)
    assert np.allclose(np.asarray(out), np.asarray(ref), atol=1e-5, rtol=1e-5)

    # Case 2: L tiled into 128-lane blocks -> exercises the halo blocks across tile seams.
    B2, C2, L2 = 2, 8, 512
    k5, k6 = jax.random.split(k1)
    x2 = jax.random.normal(k5, (B2, C2, L2), dtype=jnp.float32)
    ax2 = jax.random.normal(k6, (B2, C2, L2), dtype=jnp.float32)
    out2 = jax.block_until_ready(spatial_attention(x2, ax2, w, b, l_tile=128))
    ref2 = spatial_attention_ref(x2, ax2, w, b)
    assert np.allclose(np.asarray(out2), np.asarray(ref2), atol=1e-5, rtol=1e-5)

    # Case 3: single-input fast path (another_x is x) -> 2-stream HBM traffic.
    out3 = jax.block_until_ready(spatial_attention(x2, x2, w, b, l_tile=128))
    ref3 = spatial_attention_ref(x2, x2, w, b)
    assert np.allclose(np.asarray(out3), np.asarray(ref3), atol=1e-5, rtol=1e-5)

    # Case 4: non-128-divisible L with pad-to-128 wrapper (B=1 also checks parallel/parallel grid).
    B4, C4, L4 = 1, 4, 200
    k7, k8 = jax.random.split(k2)
    x4 = jax.random.normal(k7, (B4, C4, L4), dtype=jnp.float32)
    ax4 = jax.random.normal(k8, (B4, C4, L4), dtype=jnp.float32)
    out4 = jax.block_until_ready(spatial_attention(x4, ax4, w, b, l_tile=128, pad_to_128=True))
    ref4 = spatial_attention_ref(x4, ax4, w, b)
    assert np.allclose(np.asarray(out4), np.asarray(ref4), atol=1e-5, rtol=1e-5)

    print("KERNEL_OK")
</pallas_src>

<mosaic_0001>
module attributes {stable_mosaic.version = 11 : i64} {
  func.func @kernel(%arg0: i32, %arg1: i32, %arg2: memref<6xf32, #tpu.memory_space<smem>>, %arg3: memref<1xf32, #tpu.memory_space<smem>>, %arg4: memref<1x4x16xf32, #tpu.memory_space<vmem>>, %arg5: memref<1x4x16xf32, #tpu.memory_space<vmem>>, %arg6: memref<1x4x16xf32, #tpu.memory_space<vmem>>) attributes {dimension_semantics = [#tpu.dimension_semantics<parallel>, #tpu.dimension_semantics<parallel>], iteration_bounds = array<i64: 2, 1>, scalar_prefetch = 0 : i64, scratch_operands = 0 : i64, tpu.core_type = #tpu.core_type<tc>, window_params = [{transform_indices = @transform_0, window_bounds = array<i64: 6>}, {transform_indices = @transform_1, window_bounds = array<i64: 1>}, {transform_indices = @transform_2, window_bounds = array<i64: 1, 4, 16>}, {transform_indices = @transform_3, window_bounds = array<i64: 1, 4, 16>}, {transform_indices = @transform_4, window_bounds = array<i64: 1, 4, 16>}]} {
    %c0 = arith.constant 0 : index
    %c0_0 = arith.constant 0 : index
    %c0_1 = arith.constant 0 : index
    %0 = vector.load %arg4[%c0, %c0_0, %c0_1] : memref<1x4x16xf32, #tpu.memory_space<vmem>>, vector<1x4x16xf32>
    %1 = vector.shape_cast %0 : vector<1x4x16xf32> to vector<4x16xf32>
    %cst = arith.constant dense<0xFF800000> : vector<16xf32>
    %2 = vector.multi_reduction <maximumf>, %1, %cst [0] : vector<4x16xf32> to vector<16xf32>
    %3 = vector.shape_cast %2 : vector<16xf32> to vector<1x16xf32>
    %cst_2 = arith.constant dense<0.000000e+00> : vector<16xf32>
    %4 = vector.multi_reduction <add>, %1, %cst_2 [0] : vector<4x16xf32> to vector<16xf32>
    %5 = vector.shape_cast %4 : vector<16xf32> to vector<1x16xf32>
    %6 = tpu.concatenate %3, %5 in 0 : vector<1x16xf32>, vector<1x16xf32> -> vector<2x16xf32>
    %cst_3 = arith.constant 0.000000e+00 : f32
    %7 = vector.broadcast %cst_3 : f32 to vector<2x1xf32>
    %cst_4 = arith.constant 0.000000e+00 : f32
    %8 = vector.broadcast %cst_4 : f32 to vector<2x1xf32>
    %9 = vector.extract_strided_slice %6 {offsets = [0, 0], sizes = [2, 15], strides = [1, 1]} : vector<2x16xf32> to vector<2x15xf32>
    %10 = tpu.concatenate %7, %9 in 1 : vector<2x1xf32>, vector<2x15xf32> -> vector<2x16xf32>
    %11 = vector.extract_strided_slice %6 {offsets = [0, 1], sizes = [2, 15], strides = [1, 1]} : vector<2x16xf32> to vector<2x15xf32>
    %12 = tpu.concatenate %11, %8 in 1 : vector<2x15xf32>, vector<2x1xf32> -> vector<2x16xf32>
    %c0_5 = arith.constant 0 : index
    %13 = memref.load %arg2[%c0_5] : memref<6xf32, #tpu.memory_space<smem>>
    %14 = vector.extract_strided_slice %10 {offsets = [0, 0], sizes = [1, 16], strides = [1, 1]} : vector<2x16xf32> to vector<1x16xf32>
    %15 = vector.broadcast %13 : f32 to vector<1x16xf32>
    %16 = arith.mulf %15, %14 : vector<1x16xf32>
    %c1 = arith.constant 1 : index
    %17 = memref.load %arg2[%c1] : memref<6xf32, #tpu.memory_space<smem>>
    %18 = vector.extract_strided_slice %6 {offsets = [0, 0], sizes = [1, 16], strides = [1, 1]} : vector<2x16xf32> to vector<1x16xf32>
    %19 = vector.broadcast %17 : f32 to vector<1x16xf32>
    %20 = arith.mulf %19, %18 : vector<1x16xf32>
    %21 = arith.addf %16, %20 : vector<1x16xf32>
    %c2 = arith.constant 2 : index
    %22 = memref.load %arg2[%c2] : memref<6xf32, #tpu.memory_space<smem>>
    %23 = vector.extract_strided_slice %12 {offsets = [0, 0], sizes = [1, 16], strides = [1, 1]} : vector<2x16xf32> to vector<1x16xf32>
    %24 = vector.broadcast %22 : f32 to vector<1x16xf32>
    %25 = arith.mulf %24, %23 : vector<1x16xf32>
    %26 = arith.addf %21, %25 : vector<1x16xf32>
    %c3 = arith.constant 3 : index
    %27 = memref.load %arg2[%c3] : memref<6xf32, #tpu.memory_space<smem>>
    %28 = vector.extract_strided_slice %10 {offsets = [1, 0], sizes = [1, 16], strides = [1, 1]} : vector<2x16xf32> to vector<1x16xf32>
    %29 = vector.broadcast %27 : f32 to vector<1x16xf32>
    %30 = arith.mulf %29, %28 : vector<1x16xf32>
    %31 = arith.addf %26, %30 : vector<1x16xf32>
    %c4 = arith.constant 4 : index
    %32 = memref.load %arg2[%c4] : memref<6xf32, #tpu.memory_space<smem>>
    %33 = vector.extract_strided_slice %6 {offsets = [1, 0], sizes = [1, 16], strides = [1, 1]} : vector<2x16xf32> to vector<1x16xf32>
    %34 = vector.broadcast %32 : f32 to vector<1x16xf32>
    %35 = arith.mulf %34, %33 : vector<1x16xf32>
    %36 = arith.addf %31, %35 : vector<1x16xf32>
    %c5 = arith.constant 5 : index
    %37 = memref.load %arg2[%c5] : memref<6xf32, #tpu.memory_space<smem>>
    %38 = vector.extract_strided_slice %12 {offsets = [1, 0], sizes = [1, 16], strides = [1, 1]} : vector<2x16xf32> to vector<1x16xf32>
    %39 = vector.broadcast %37 : f32 to vector<1x16xf32>
    %40 = arith.mulf %39, %38 : vector<1x16xf32>
    %41 = arith.addf %36, %40 : vector<1x16xf32>
    %c0_6 = arith.constant 0 : index
    %42 = memref.load %arg3[%c0_6] : memref<1xf32, #tpu.memory_space<smem>>
    %43 = vector.broadcast %42 : f32 to vector<1x16xf32>
    %44 = arith.addf %41, %43 : vector<1x16xf32>
    %45 = arith.negf %44 : vector<1x16xf32>
    %46 = math.exp %45 : vector<1x16xf32>
    %cst_7 = arith.constant 1.000000e+00 : f32
    %47 = vector.broadcast %cst_7 : f32 to vector<1x16xf32>
    %48 = arith.addf %47, %46 : vector<1x16xf32>
    %49 = arith.divf %47, %48 : vector<1x16xf32>
    %c0_8 = arith.constant 0 : index
    %c0_9 = arith.constant 0 : index
    %c0_10 = arith.constant 0 : index
    %50 = vector.load %arg5[%c0_8, %c0_9, %c0_10] : memref<1x4x16xf32, #tpu.memory_space<vmem>>, vector<1x4x16xf32>
    %51 = vector.shape_cast %50 : vector<1x4x16xf32> to vector<4x16xf32>
    %52 = vector.broadcast %49 : vector<1x16xf32> to vector<4x16xf32>
    %53 = arith.mulf %51, %52 : vector<4x16xf32>
    %c0_11 = arith.constant 0 : index
    %c0_12 = arith.constant 0 : index
    %c0_13 = arith.constant 0 : index
    %54 = vector.load %arg6[%c0_11, %c0_12, %c0_13] : memref<1x4x16xf32, #tpu.memory_space<vmem>>, vector<1x4x16xf32>
    %55 = vector.shape_cast %54 : vector<1x4x16xf32> to vector<4x16xf32>
    %56 = vector.shape_cast %53 : vector<4x16xf32> to vector<1x4x16xf32>
    tpu.vector_store %arg6[%c0_11, %c0_12, %c0_13], %56 {strides = array<i32>} : memref<1x4x16xf32, #tpu.memory_space<vmem>>, vector<1x4x16xf32>,
    return
  }
  func.func @transform_0(%arg0: i32, %arg1: i32) -> i32 {
    %c0_i32 = arith.constant 0 : i32
    %c0_i32_0 = arith.constant 0 : i32
    return %c0_i32 : i32
  }
  func.func @transform_1(%arg0: i32, %arg1: i32) -> i32 {
    %c0_i32 = arith.constant 0 : i32
    %c0_i32_0 = arith.constant 0 : i32
    return %c0_i32 : i32
  }
  func.func @transform_2(%arg0: i32, %arg1: i32) -> (i32, i32, i32) {
    %c0_i32 = arith.constant 0 : i32
    %c0_i32_0 = arith.constant 0 : i32
    return %arg0, %c0_i32, %arg1 : i32, i32, i32
  }
  func.func @transform_3(%arg0: i32, %arg1: i32) -> (i32, i32, i32) {
    %c0_i32 = arith.constant 0 : i32
    %c0_i32_0 = arith.constant 0 : i32
    return %arg0, %c0_i32, %arg1 : i32, i32, i32
  }
  func.func @transform_4(%arg0: i32, %arg1: i32) -> (i32, i32, i32) {
    %c0_i32 = arith.constant 0 : i32
    %c0_i32_0 = arith.constant 0 : i32
    return %arg0, %c0_i32, %arg1 : i32, i32, i32
  }
}

</mosaic_0001>

<llo_original>
// kernel: tpu_custom_call.1
$region0: #{tpu_custom_call.1}
  #allocation0 [shape = 'u32[]', space=smem, size = 0x4, offset = 0x4, fixed_abs, tag = 'smem constant byte address 0x4 - core index']
  #allocation1 [shape = 'u32[144,128]{1,0:T(1,128)}', space=vmem, size = 0x12000, scoped, tag = 'internal scratch']
  #allocation2 [shape = 'f32[1]{0:T(128)S(6)}', space=smem, size = 0x200, scoped, tag = 'scoped memory for tpu_custom_call.1']
  %s0 = inlined_call_operand.vmem [shape: f32[6], index: 0, kind: input, shape index: {}]
  %s1 = inlined_call_operand.<no memory space> [shape: f32[1], index: 1, kind: input, shape index: {}]
  %s2 = inlined_call_operand.hbm [shape: f32[2,4,16], index: 2, kind: input, shape index: {}]
  %s3 = inlined_call_operand.vmem [shape: f32[2,4,16], index: 3, kind: input, shape index: {}]
  %s4 = inlined_call_operand.hbm [shape: f32[2,4,16], index: 4, kind: output, shape index: {}]
  %s5 = sld [smem:[#allocation0]]
  $region57: #{tpu_custom_call.1} parent=0
    _
  %s7 = ssub.s32 1, %s5
  %s8 = scalar_select 0, %s7, %s5
  %9 = sst [smem:[#allocation2]] %s1
  $region1: #{tpu_custom_call.1} parent=0
    #allocation3 [shape = 'u8[512]{0}', space=smem, size = 0x200, scoped, tag = 'input window, operand 0, single buffered']
    #allocation4 [shape = 's32[2]{0}', space=sflag, size = 0x8, scoped, tag = 'scoped memory for tpu_custom_call.1']
    #allocation5 [shape = 's32[2]{0}', space=sflag, size = 0x8, scoped, tag = 'scoped memory for tpu_custom_call.1']
    #allocation6 [shape = 's32[2]{0}', space=sflag, size = 0x8, scoped, tag = 'scoped memory for tpu_custom_call.1']
    #allocation7 [shape = 'u8[4096]{0}', space=vmem, size = 0x1000, scoped, tag = 'input window, operand 2']
    #allocation8 [shape = 'u8[4096]{0}', space=vmem, size = 0x1000, scoped, tag = 'output window, operand 0']
    %10 = vsyncpa [#allocation6], 0
    %11 = vsyncpa [#allocation4], 0
    %s12 = scalar_lea.sflag [#allocation4], 1
    %13 = vsyncpa %s12, 0
    %14 = vsyncpa [#allocation5], 0
    %s15 = scalar_lea.sflag [#allocation5], 1
    %16 = vsyncpa %s15, 0
    loop: start=0, step=1, limit=4
    $region2: #{tpu_custom_call.1} parent=1 // loop_pre_header
      _
    $region3: #{tpu_custom_call.1} parent=1 // loop_header
      %s18 = sphi 0, %s22
      %p19 = scmp.ge.s32.totalorder %s18, 4
      %s25 = sphi 0, %s37
      %s26 = sphi 0, %s33
      %s27 = sphi 0, %s25
      %s28 = sphi 0, %s26
      %s29 = sphi 0, %s27
      %s30 = sphi 0, %s28
      %s38 = sphi 0, %s38
      %s40 = sphi 0, %s38
      %s41 = sphi 0, %s40
      %s55 = sphi 0, %s41
      %s59 = sphi 0, %s59
      %s61 = sphi 0, %s59
      %s62 = sphi 0, %s61
      %s76 = sphi 0, %s62
      %s84 = sphi 0, %s86
      %s87 = sphi 0, %s84
      %s88 = sphi 0, %s87
      %s104 = sphi 0, %s88
      %s112 = sphi 0, %s114
      %s115 = sphi 0, %s112
      %s116 = sphi 0, %s115
      %s132 = sphi 0, %s116
      %s140 = sphi 0, %s142
      %s143 = sphi 0, %s140
      %s144 = sphi 0, %s143
      %s160 = sphi 0, %s144
    $region4: #{tpu_custom_call.1} parent=1 // loop_header_branch
      %21 = sbr.rel (%p19) target = $region8
    $region5: #{tpu_custom_call.1} parent=1 // loop_body
      %s23 = ssub.s32 %s18, 1
      %s24 = ssub.s32 %s18, 2
      %s31 = sadd.s32 1, %s26
      %p32 = scmp.ge.s32.totalorder %s31, 1
      %s33 = scalar_select %p32, 0, %s31
      %s34 = sadd.s32 1, %s25
      %s35 = scalar_select %p32, %s34, %s25
      %p36 = scmp.ge.s32.totalorder %s35, 2
      %s37 = scalar_select %p36, 0, %s35
      %s39 = sadd.s32 %s38, 1
      %p42 = scmp.eq.s32.totalorder %s18, 1
      %p43 = scmp.ne.s32.totalorder %s38, %s40
      %p44 = scmp.eq.s32.totalorder %s18, 0
      %p45 = por %p43, %p44
      %p46 = scmp.ne.s32.totalorder %s38, %s40
      %p47 = scmp.eq.s32.totalorder %s23, 1
      %p48 = por %p46, %p47
      %p49 = scmp.ne.s32.totalorder %s40, %s41
      %p50 = scmp.eq.s32.totalorder %s23, 0
      %p51 = por %p49, %p50
      %p52 = scmp.ne.s32.totalorder %s40, %s41
      %p53 = scmp.eq.s32.totalorder %s24, 1
      %p54 = por %p52, %p53
      %p56 = scmp.ne.s32.totalorder %s41, %s55
      %p57 = scmp.eq.s32.totalorder %s24, 0
      %p58 = por %p56, %p57
      %s60 = sadd.s32 %s59, 1
      %p63 = scmp.eq.s32.totalorder %s18, 1
      %p64 = scmp.ne.s32.totalorder %s59, %s61
      %p65 = scmp.eq.s32.totalorder %s18, 0
      %p66 = por %p64, %p65
      %p67 = scmp.ne.s32.totalorder %s59, %s61
      %p68 = scmp.eq.s32.totalorder %s23, 1
      %p69 = por %p67, %p68
      %p70 = scmp.ne.s32.totalorder %s61, %s62
      %p71 = scmp.eq.s32.totalorder %s23, 0
      %p72 = por %p70, %p71
      %p73 = scmp.ne.s32.totalorder %s61, %s62
      %p74 = scmp.eq.s32.totalorder %s24, 1
      %p75 = por %p73, %p74
      %p77 = scmp.ne.s32.totalorder %s62, %s76
      %p78 = scmp.eq.s32.totalorder %s24, 0
      %p79 = por %p77, %p78
      %s80 = ssub.s32 %s25, %s37
      %s81 = ssub.s32 %s26, %s33
      %s82 = sor.u32 %s80, %s81
      %p83 = scmp.eq.s32.totalorder %s82, 0
      %s85 = sadd.s32 %s84, 1
      %s86 = scalar_select %p83, %s84, %s85
      %p89 = pneg %p83
      %p90 = scmp.eq.s32.totalorder %s18, 1
      %p91 = por %p89, %p90
      %p92 = scmp.ne.s32.totalorder %s84, %s87
      %p93 = scmp.eq.s32.totalorder %s18, 0
      %p94 = por %p92, %p93
      %p95 = scmp.ne.s32.totalorder %s84, %s87
      %p96 = scmp.eq.s32.totalorder %s23, 1
      %p97 = por %p95, %p96
      %p98 = scmp.ne.s32.totalorder %s87, %s88
      %p99 = scmp.eq.s32.totalorder %s23, 0
      %p100 = por %p98, %p99
      %p101 = scmp.ne.s32.totalorder %s87, %s88
      %p102 = scmp.eq.s32.totalorder %s24, 1
      %p103 = por %p101, %p102
      %p105 = scmp.ne.s32.totalorder %s88, %s104
      %p106 = scmp.eq.s32.totalorder %s24, 0
      %p107 = por %p105, %p106
      %s108 = ssub.s32 %s25, %s37
      %s109 = ssub.s32 %s26, %s33
      %s110 = sor.u32 %s108, %s109
      %p111 = scmp.eq.s32.totalorder %s110, 0
      %s113 = sadd.s32 %s112, 1
      %s114 = scalar_select %p111, %s112, %s113
      %p117 = pneg %p111
      %p118 = scmp.eq.s32.totalorder %s18, 1
      %p119 = por %p117, %p118
      %p120 = scmp.ne.s32.totalorder %s112, %s115
      %p121 = scmp.eq.s32.totalorder %s18, 0
      %p122 = por %p120, %p121
      %p123 = scmp.ne.s32.totalorder %s112, %s115
      %p124 = scmp.eq.s32.totalorder %s23, 1
      %p125 = por %p123, %p124
      %p126 = scmp.ne.s32.totalorder %s115, %s116
      %p127 = scmp.eq.s32.totalorder %s23, 0
      %p128 = por %p126, %p127
      %p129 = scmp.ne.s32.totalorder %s115, %s116
      %p130 = scmp.eq.s32.totalorder %s24, 1
      %p131 = por %p129, %p130
      %p133 = scmp.ne.s32.totalorder %s116, %s132
      %p134 = scmp.eq.s32.totalorder %s24, 0
      %p135 = por %p133, %p134
      %s136 = ssub.s32 %s25, %s37
      %s137 = ssub.s32 %s26, %s33
      %s138 = sor.u32 %s136, %s137
      %p139 = scmp.eq.s32.totalorder %s138, 0
      %s141 = sadd.s32 %s140, 1
      %s142 = scalar_select %p139, %s140, %s141
      %p145 = pneg %p139
      %p146 = scmp.eq.s32.totalorder %s18, 1
      %p147 = por %p145, %p146
      %p148 = scmp.ne.s32.totalorder %s140, %s143
      %p149 = scmp.eq.s32.totalorder %s18, 0
      %p150 = por %p148, %p149
      %p151 = scmp.ne.s32.totalorder %s140, %s143
      %p152 = scmp.eq.s32.totalorder %s23, 1
      %p153 = por %p151, %p152
      %p154 = scmp.ne.s32.totalorder %s143, %s144
      %p155 = scmp.eq.s32.totalorder %s23, 0
      %p156 = por %p154, %p155
      %p157 = scmp.ne.s32.totalorder %s143, %s144
      %p158 = scmp.eq.s32.totalorder %s24, 1
      %p159 = por %p157, %p158
      %p161 = scmp.ne.s32.totalorder %s144, %s160
      %p162 = scmp.eq.s32.totalorder %s24, 0
      %p163 = por %p161, %p162
      %p164 = scmp.le.s32.totalorder 1, %s18
      %p165 = scmp.lt.s32.totalorder %s18, 3
      %p166 = pnand %p164, %p165
      %p167 = pneg %p166
      // Predicated region
      $region9: #{tpu_custom_call.1} parent=5 // pred_check
        _
      $region10: #{tpu_custom_call.1} parent=5 // pred_check_branch
        %169 = sbr.rel (%p166) target = $region12
      $region11: #{tpu_custom_call.1} parent=5 // pred_region
        %s170 = ssub.s32 %s18, 1
        // Predicated region
        $region13: #{tpu_custom_call.1} parent=11 // pred_check
          %p171 = pneg %p51
        $region14: #{tpu_custom_call.1} parent=11 // pred_check_branch
          %173 = sbr.rel (%p171) target = $region16
        $region15: #{tpu_custom_call.1} parent=11 // pred_region
          %s175 = ssub.s32 16, 16
          %176 = vsyncadd [#allocation6], %s175
          %s178 = sshll.u32 %s0, 4
          %s179 = int_to_ptr.vmem [resolvable:$true] %s178
          %181 = dma.vmem_to_smem %s179, 16, [#allocation3], [#allocation6]
        $region16: #{tpu_custom_call.1} parent=11 // pred_fallthru
          _
        // Predicated region
        $region17: #{tpu_custom_call.1} parent=11 // pred_check
          %p182 = pneg %p72
        $region18: #{tpu_custom_call.1} parent=11 // pred_check_branch
          %184 = sbr.rel (%p182) target = $region20
        $region19: #{tpu_custom_call.1} parent=11 // pred_region
          _
        $region20: #{tpu_custom_call.1} parent=11 // pred_fallthru
          _
      $region12: #{tpu_custom_call.1} parent=5 // pred_fallthru
        _
      %p185 = scmp.lt.s32.totalorder %s18, 2
      // Predicated region
      $region21: #{tpu_custom_call.1} parent=5 // pred_check
        %p186 = pneg %p185
      $region22: #{tpu_custom_call.1} parent=5 // pred_check_branch
        %188 = sbr.rel (%p186) target = $region24
      $region23: #{tpu_custom_call.1} parent=5 // pred_region
        // Predicated region
        $region25: #{tpu_custom_call.1} parent=23 // pred_check
          %p189 = pneg %p94
        $region26: #{tpu_custom_call.1} parent=23 // pred_check_branch
          %191 = sbr.rel (%p189) target = $region28
        $region27: #{tpu_custom_call.1} parent=23 // pred_region
          %s192 = sand.u32 %s84, 1
          %s193 = scalar_lea.sflag [#allocation4], %s192
          %s194 = sand.u32 %s84, 1
          %s195 = smul.addr %s194, 4
          %s196 = scalar_lea.vmem [#allocation7], %s195
          %s198 = ssub.s32 64, 64
          %199 = vsyncadd %s193, %s198
          %s200 = sadd.s32 %s26, %s25
          %s201 = smul.addr %s200, 64
          %s202 = scalar_lea.hbm %s2, %s201
          %s204 = sshll.u32 %s196, 4
          %s205 = int_to_ptr.vmem [resolvable:$true] %s204
          %207 = dma.hbm_to_vmem [thread:$0]  %s202, 64, %s205, %s193
        $region28: #{tpu_custom_call.1} parent=23 // pred_fallthru
          _
        // Predicated region
        $region29: #{tpu_custom_call.1} parent=23 // pred_check
          %p208 = pneg %p122
        $region30: #{tpu_custom_call.1} parent=23 // pred_check_branch
          %210 = sbr.rel (%p208) target = $region32
        $region31: #{tpu_custom_call.1} parent=23 // pred_region
          %p211 = scmp.lt.s32.totalorder %s25, 1
          %s212 = scalar_select %p211, %s25, 1
          %p213 = scmp.lt.s32.totalorder %s26, 0
          %s214 = scalar_select %p213, %s26, 0
          %s215 = sadd.s32 %s214, %s212
          %s216 = smul.addr %s215, 4
          %s217 = scalar_lea.vmem %s3, %s216
        $region32: #{tpu_custom_call.1} parent=23 // pred_fallthru
          _
      $region24: #{tpu_custom_call.1} parent=5 // pred_fallthru
        _
      %p218 = scmp.le.s32.totalorder 1, %s18
      %p219 = scmp.lt.s32.totalorder %s18, 3
      %p220 = pnand %p218, %p219
      %p221 = pneg %p220
      // Predicated region
      $region33: #{tpu_custom_call.1} parent=5 // pred_check
        _
      $region34: #{tpu_custom_call.1} parent=5 // pred_check_branch
        %223 = sbr.rel (%p220) target = $region36
      $region35: #{tpu_custom_call.1} parent=5 // pred_region
        %s224 = ssub.s32 %s18, 1
        // Predicated region
        $region37: #{tpu_custom_call.1} parent=35 // pred_check
          %p225 = pneg %p51
        $region38: #{tpu_custom_call.1} parent=35 // pred_check_branch
          %227 = sbr.rel (%p225) target = $region40
        $region39: #{tpu_custom_call.1} parent=35 // pred_region
          %228 = dma.done [#allocation6], 16
        $region40: #{tpu_custom_call.1} parent=35 // pred_fallthru
          _
        %s229 = sand.u32 %s87, 1
        %s230 = scalar_lea.sflag [#allocation4], %s229
        %s231 = sand.u32 %s87, 1
        %s232 = smul.addr %s231, 4
        %s233 = scalar_lea.vmem [#allocation7], %s232
        // Predicated region
        $region41: #{tpu_custom_call.1} parent=35 // pred_check
          %p234 = pneg %p100
        $region42: #{tpu_custom_call.1} parent=35 // pred_check_branch
          %236 = sbr.rel (%p234) target = $region44
        $region43: #{tpu_custom_call.1} parent=35 // pred_region
          %237 = dma.done %s230, 64
        $region44: #{tpu_custom_call.1} parent=35 // pred_fallthru
          _
        %238 = sfence
        %p239 = pneg %p51
        %p240 = pneg %p48
        %p241 = pneg %p72
        %p242 = pneg %p69
        %s243 = sand.u32 %s87, 1
        %s244 = scalar_lea.sflag [#allocation4], %s243
        %s245 = sand.u32 %s87, 1
        %s246 = smul.addr %s245, 4
        %s247 = scalar_lea.vmem [#allocation7], %s246
        %p248 = pneg %p100
        %p249 = pneg %p97
        %p250 = scmp.lt.s32.totalorder %s27, 1
        %s251 = scalar_select %p250, %s27, 1
        %p252 = scmp.lt.s32.totalorder %s28, 0
        %s253 = scalar_select %p252, %s28, 0
        %s254 = sadd.s32 %s253, %s251
        %s255 = smul.addr %s254, 4
        %s256 = scalar_lea.vmem %s3, %s255
        %p257 = pneg %p128
        %p258 = pneg %p125
        %p259 = pneg %p156
        %p260 = pneg %p153
        %s261 = sand.u32 %s143, 1
        %s262 = scalar_lea.sflag [#allocation5], %s261
        %s263 = sand.u32 %s143, 1
        %s264 = smul.addr %s263, 4
        %s265 = scalar_lea.vmem [#allocation8], %s264
        %p266 = scmp.lt.s32.totalorder %s27, 1
        %s267 = scalar_select %p266, %s27, 1
        %p268 = scmp.lt.s32.totalorder %s28, 0
        %s269 = scalar_select %p268, %s28, 0
        %s270 = sadd.s32 %s269, %s267
        %s271 = smul.addr %s270, 4
        %s272 = scalar_lea.vmem %s3, %s271
        %v273 = vld [vmem:[%s233] sm:$0xf]
        %vm274 = vcmask 125952
        %v275 = vsel %vm274, %v273, -inf
        %v276 = vrot.slane %v275, 4
        %v277 = vmax.f32 %v275, %v276
        %v278 = vrot.slane %v277, 2
        %v279 = vmax.f32 %v277, %v278
        %v280 = vrot.slane %v279, 1
        %v281 = vmax.f32 %v279, %v280
        %v282 = vsel %vm274, %v273, 0.0
        %v283 = vrot.slane %v282, 4
        %v284 = vadd.f32 %v282, %v283
        %v285 = vrot.slane %v284, 2
        %v286 = vadd.f32 %v284, %v285
        %v287 = vrot.slane %v286, 1
        %v288 = vadd.f32 %v286, %v287
        %vm289 = vcmask 1040384
        %v290 = vsel %vm289, %v281, %v288
        %292 = vrot.lane.b32.xlu0 %v290, 1
        %v293 = vpop.permute.xlu0 %292
        %vm295 = vcmask 7168
        %v296 = vsel %vm295, 0.0, %v293
        %297 = vrot.lane.b32.xlu0 %v290, 127
        %v298 = vpop.permute.xlu0 %297
        %vm300 = vcmask 121856
        %v301 = vsel %vm300, %v298, 0.0
        %s302 = sld [smem:[#allocation3]]
        %v303 = vstv %s302
        %v304 = vmul.f32 %v303, %v296
        %s305 = sld [smem:[#allocation3 + $0x1]]
        %v306 = vstv %s305
        %v307 = vmul.f32 %v306, %v290
        %v308 = vadd.f32 %v304, %v307
        %s309 = sld [smem:[#allocation3 + $0x2]]
        %v310 = vstv %s309
        %v311 = vmul.f32 %v310, %v301
        %v312 = vadd.f32 %v308, %v311
        %s313 = sld [smem:[#allocation3 + $0x3]]
        %v314 = vstv %s313
        %v315 = vmul.f32 %v314, %v296
        %v317 = vrot.slane %v315, 1
        %v319 = vadd.f32 %v312, %v317
        %s320 = sld [smem:[#allocation3 + $0x4]]
        %v321 = vstv %s320
        %v322 = vmul.f32 %v321, %v290
        %v324 = vrot.slane %v322, 1
        %v326 = vadd.f32 %v319, %v324
        %s327 = sld [smem:[#allocation3 + $0x5]]
        %v328 = vstv %s327
        %v329 = vmul.f32 %v328, %v301
        %v331 = vrot.slane %v329, 1
        %v333 = vadd.f32 %v326, %v331
        %s334 = sld [smem:[#allocation2]]
        %v335 = vstv %s334
        %v336 = vadd.f32 %v333, %v335
        %v337 = vxor.u32 %v336, 2147483648
        %v338 = vmul.f32 %v337, 1.442695
        %v339 = vpow.pop %v338
        %v340 = vadd.f32 %v339, 1.0
        %v341 = vrcp.pop %v340
        %v342 = vmul.f32 1.0, %v341
        %v343 = vld [vmem:[%s272] sm:$0xf]
        %v344 = vlaneseq
        %v345 = vshrl.u32 %v344, 7
        %v346 = vsub.s32 0, %v345
        %v347 = vrot.slane %v342, %v346
        %v348 = vmul.f32 %v343, %v347
        %349 = vst.msk [vmem:[%s265] sm:$0xf] %vm274, %v348
        %s350 = sand.u32 %s143, 1
        %s351 = scalar_lea.sflag [#allocation5], %s350
        %s352 = sand.u32 %s143, 1
        %s353 = smul.addr %s352, 4
        %s354 = scalar_lea.vmem [#allocation8], %s353
        // Predicated region
        $region45: #{tpu_custom_call.1} parent=35 // pred_check
          %p355 = pneg %p153
        $region46: #{tpu_custom_call.1} parent=35 // pred_check_branch
          %357 = sbr.rel (%p355) target = $region48
        $region47: #{tpu_custom_call.1} parent=35 // pred_region
          %s359 = ssub.s32 64, 64
          %360 = vsyncadd %s351, %s359
          %s361 = sadd.s32 %s28, %s27
          %s362 = smul.addr %s361, 64
          %s363 = scalar_lea.hbm %s4, %s362
          %s365 = sshll.u32 %s354, 4
          %s366 = int_to_ptr.vmem [resolvable:$true] %s365
          %368 = dma.vmem_to_hbm [thread:$0]  %s366, 64, %s363, %s351
        $region48: #{tpu_custom_call.1} parent=35 // pred_fallthru
          _
      $region36: #{tpu_custom_call.1} parent=5 // pred_fallthru
        _
      %p369 = scmp.le.s32.totalorder 2, %s18
      // Predicated region
      $region49: #{tpu_custom_call.1} parent=5 // pred_check
        %p370 = pneg %p369
      $region50: #{tpu_custom_call.1} parent=5 // pred_check_branch
        %372 = sbr.rel (%p370) target = $region52
      $region51: #{tpu_custom_call.1} parent=5 // pred_region
        %s373 = ssub.s32 %s18, 2
        // Predicated region
        $region53: #{tpu_custom_call.1} parent=51 // pred_check
          %p374 = pneg %p159
        $region54: #{tpu_custom_call.1} parent=51 // pred_check_branch
          %376 = sbr.rel (%p374) target = $region56
        $region55: #{tpu_custom_call.1} parent=51 // pred_region
          %s377 = sand.u32 %s144, 1
          %s378 = scalar_lea.sflag [#allocation5], %s377
          %s379 = sand.u32 %s144, 1
          %s380 = smul.addr %s379, 4
          %s381 = scalar_lea.vmem [#allocation8], %s380
          %382 = dma.done %s378, 64
        $region56: #{tpu_custom_call.1} parent=51 // pred_fallthru
          _
      $region52: #{tpu_custom_call.1} parent=5 // pred_fallthru
        _
    $region6: #{tpu_custom_call.1} parent=1 // loop_footer
      %s22 = sadd.s32 1, %s18
    $region7: #{tpu_custom_call.1} parent=1 // loop_footer_branch
      %17 = sbr.rel target = $region3
    $region8: #{tpu_custom_call.1} parent=1 // loop_exit
      _
    %383 = vsyncpa [#allocation4], 1
    %s384 = scalar_lea.sflag [#allocation4], 1
    %385 = vsyncpa %s384, 1
    %386 = vsyncpa [#allocation5], 1
    %s387 = scalar_lea.sflag [#allocation5], 1
    %388 = vsyncpa %s387, 1
    %389 = vsyncpa [#allocation6], 1
    %s390 = scalar_lea.sflag [#allocation6], 1
    %391 = vsyncpa %s390, 1

</llo_original>
